<compile_context>
chip_gen: v6e
topology: v6e:2x2x1
jax: 0.10.0
libtpu: 0.0.40
codegen_flags: <defaults>
</compile_context>

<pallas_src>
import jax
import jax.numpy as jnp
from jax import lax
from jax.experimental import pallas as pl
from jax.experimental.pallas import tpu as pltpu

SIGMA_DATA = 0.5

# ---- synthetic model config (small) ----
HIDDEN = 32          # D
ADALN_LORA_DIM = 16  # L
PATCH_SPATIAL = 2    # p
PATCH_TEMPORAL = 1   # t
OUT_CHANNELS = 4     # C
B, T, H, W = 2, 4, 4, 4                               # patchified token grid
P_OUT = PATCH_SPATIAL * PATCH_SPATIAL * PATCH_TEMPORAL * OUT_CHANNELS  # 16


# --------------------------------------------------------------------------
# Fused Pallas kernel
# --------------------------------------------------------------------------
def _final_layer_kernel(emb_ref, lora_s_ref, lora_c_ref,
                        w1_ref, w2s_ref, w2c_ref,
                        x_ref, wt_ref,
                        xt_ref, cskip_ref, cout_ref,
                        x0_ref):
    # ---- adaLN-lora prologue (tiny; runs once inside the fused kernel) ----
    # shift = silu(emb) @ W1 @ W2[:, :D] + lora[:, :D]
    # scale = silu(emb) @ W1 @ W2[:, D:] + lora[:, D:2D]
    h = jax.nn.silu(emb_ref[...])                                         # (B, D)
    t = jnp.dot(h, w1_ref[...], preferred_element_type=jnp.float32)      # (B, L)
    shift = jnp.dot(t, w2s_ref[...],
                    preferred_element_type=jnp.float32) + lora_s_ref[...]  # (B, D)
    scale = jnp.dot(t, w2c_ref[...],
                    preferred_element_type=jnp.float32) + lora_c_ref[...]  # (B, D)

    # ---- LayerNorm (no affine, eps=1e-6) + modulate, one (B, N, D) block ----
    x = x_ref[...]                                                        # (B, N, D)
    mu = jnp.mean(x, axis=-1, keepdims=True)
    xc = x - mu
    var = jnp.mean(xc * xc, axis=-1, keepdims=True)                       # reuse centered x
    xn = xc * lax.rsqrt(var + 1e-6)
    y = xn * (1.0 + scale[:, None, :]) + shift[:, None, :]                # (B, N, D)

    # ---- final linear, transposed result so the store is lane-dense ----
    Bn, N, D = x_ref.shape
    y2 = y.reshape(Bn * N, D)                # leading-dim collapse (layout no-op)
    # out_t[p, row] = sum_d Wt[p, d] * y2[row, d]   ('pd,nd->pn')
    out_t = lax.dot_general(wt_ref[...], y2,
                            dimension_numbers=(((1,), (1,)), ((), ())),
                            preferred_element_type=jnp.float32)           # (P, B*N)

    # ---- fused EDM mix: x0^T = c_skip * x_t^T + c_out * out^T ----
    x0_ref[...] = cskip_ref[...] * xt_ref[...] + cout_ref[...] * out_t


def final_layer_pallas(emb, lora_s, lora_c, w1, w2s, w2c, x_bnd, w_t,
                       xt_t, cskip_lane, cout_lane):
    P, BN = xt_t.shape
    vmem_specs = [pl.BlockSpec(memory_space=pltpu.MemorySpace.VMEM) for _ in range(11)]
    return pl.pallas_call(
        _final_layer_kernel,
        out_shape=jax.ShapeDtypeStruct((P, BN), jnp.float32),
        in_specs=vmem_specs,
        out_specs=pl.BlockSpec(memory_space=pltpu.MemorySpace.VMEM),
    )(emb, lora_s, lora_c, w1, w2s, w2c, x_bnd, w_t, xt_t, cskip_lane, cout_lane)


# --------------------------------------------------------------------------
# Plain-JAX glue (per-sigma scalars, layout rearranges)
# --------------------------------------------------------------------------
def get_per_sigma_loss_weights(sigma):
    return (sigma ** 2 + SIGMA_DATA ** 2) / (sigma * SIGMA_DATA) ** 2


def edm_scaling(sigma):
    c_skip = SIGMA_DATA ** 2 / (sigma ** 2 + SIGMA_DATA ** 2)
    c_out = sigma * SIGMA_DATA / jnp.sqrt(sigma ** 2 + SIGMA_DATA ** 2)
    c_in = 1.0 / jnp.sqrt(sigma ** 2 + SIGMA_DATA ** 2)
    c_noise = 0.25 * jnp.log(sigma)
    return c_skip, c_out, c_in, c_noise


def final_layer_forward(params, inputs):
    (x, x_t, affline_emb_B_D, crossattn_emb, rope_emb_L_1_1_D, adaln_lora_B_3D,
     extra_pos_emb, original_shape, sigma) = inputs
    # crossattn_emb / rope_emb / extra_pos_emb are unused by this forward pass
    # (crossattn_emb is explicitly passed as None to decoder_head in PyTorch).
    del crossattn_emb, rope_emb_L_1_1_D, extra_pos_emb

    Tg, Hg, Wg, Bn, D = x.shape
    orig = [int(v) for v in original_shape]
    B_, C_, T_full, H_full, W_full = orig
    p, tp = PATCH_SPATIAL, PATCH_TEMPORAL
    Hp, Wp = H_full // p, W_full // p
    N = Tg * Hg * Wg                       # tokens per sample
    P = p * p * tp * C_                    # output features per token

    # 'T H W B D' -> (B, N, D) token layout (f32 compute; bf16 on v6e/v7x at scale)
    x_bnd = jnp.transpose(x, (3, 0, 1, 2, 4)).reshape(Bn, N, D).astype(jnp.float32)

    # adaLN operands: split the 2D-wide projection/lora into shift/scale halves
    # so the kernel never needs an in-register lane slice.
    emb = affline_emb_B_D.astype(jnp.float32)
    lora = adaln_lora_B_3D.astype(jnp.float32)
    lora_s, lora_c = lora[:, :D], lora[:, D:2 * D]
    w2 = params["adaln_w2"]
    w2s, w2c = w2[:, :D], w2[:, D:]

    # x_t brought into the transposed token layout (P, B*N) so the fused EDM
    # mix and the kernel's output store are lane-dense (minor dim = B*N).
    # Axis order after reshape: (B, C, T, t, Hp, p1, Wp, p2)
    xt_tok = x_t.astype(jnp.float32).reshape(B_, C_, Tg, tp, Hp, p, Wp, p)
    xt_t = jnp.transpose(xt_tok, (5, 7, 3, 1, 0, 2, 4, 6)).reshape(P, B_ * N)

    # Per-batch EDM scalars, broadcast along the lane (B*N) axis (B*N floats).
    sigma_f = sigma.astype(jnp.float32)
    c_skip, c_out, _, _ = edm_scaling(sigma_f)               # (B,)
    cskip_lane = jnp.repeat(c_skip, N)[None, :]              # (1, B*N)
    cout_lane = jnp.repeat(c_out, N)[None, :]                # (1, B*N)

    x0_t = final_layer_pallas(
        emb, lora_s, lora_c,
        params["adaln_w1"], w2s, w2c,
        x_bnd, jnp.transpose(params["linear_w"]),            # (P, D)
        xt_t, cskip_lane, cout_lane)                         # -> (P, B*N)

    # un-patchify x0 back to (B, C, T*t, H*p, W*p)
    x0 = x0_t.reshape(p, p, tp, C_, B_, Tg, Hp, Wp)
    x0 = jnp.transpose(x0, (4, 3, 5, 2, 6, 0, 7, 1))
    x0_pred = x0.reshape(B_, C_, Tg * tp, Hp * p, Wp * p).astype(x_t.dtype)

    weights_per_sigma = get_per_sigma_loss_weights(sigma_f).reshape(-1, 1, 1, 1, 1)
    return x0_pred, weights_per_sigma


# --------------------------------------------------------------------------
# Pure-JAX reference (for self-check)
# --------------------------------------------------------------------------
def reference_forward(params, inputs):
    (x, x_t, emb, _, _, lora, _, original_shape, sigma) = inputs
    Tg, Hg, Wg, Bn, D = x.shape
    orig = [int(v) for v in original_shape]
    B_, C_, T_full, H_full, W_full = orig
    p, tp = PATCH_SPATIAL, PATCH_TEMPORAL
    Hp, Wp = H_full // p, W_full // p

    x_bt_hw_d = jnp.transpose(x, (3, 0, 1, 2, 4)).reshape(Bn * Tg, Hg * Wg, D).astype(jnp.float32)
    mod = jax.nn.silu(emb.astype(jnp.float32)) @ params["adaln_w1"] @ params["adaln_w2"]
    mod = mod + lora[:, :2 * D].astype(jnp.float32)
    shift, scale = mod[:, :D], mod[:, D:]
    shift = jnp.repeat(shift, Tg, axis=0)[:, None, :]
    scale = jnp.repeat(scale, Tg, axis=0)[:, None, :]

    mu = jnp.mean(x_bt_hw_d, axis=-1, keepdims=True)
    var = jnp.mean(jnp.square(x_bt_hw_d - mu), axis=-1, keepdims=True)
    xn = (x_bt_hw_d - mu) / jnp.sqrt(var + 1e-6)
    y = (xn * (1.0 + scale) + shift) @ params["linear_w"]

    y = y.reshape(B_, Tg, Hp, Wp, p, p, tp, OUT_CHANNELS)
    y = jnp.transpose(y, (0, 7, 1, 6, 2, 4, 3, 5))
    output = y.reshape(B_, OUT_CHANNELS, Tg * tp, Hp * p, Wp * p)

    s = sigma.astype(jnp.float32).reshape(-1, 1, 1, 1, 1)
    c_skip = SIGMA_DATA ** 2 / (s ** 2 + SIGMA_DATA ** 2)
    c_out = s * SIGMA_DATA / jnp.sqrt(s ** 2 + SIGMA_DATA ** 2)
    x0 = c_skip * x_t.astype(jnp.float32) + c_out * output
    w = get_per_sigma_loss_weights(s)
    return x0, w


# --------------------------------------------------------------------------
if __name__ == "__main__":
    key = jax.random.PRNGKey(0)
    ks = jax.random.split(key, 10)

    # deterministic synthetic parameters (module __init__ shapes)
    params = {
        "adaln_w1": (jax.random.normal(ks[0], (HIDDEN, ADALN_LORA_DIM), jnp.float32)
                     * (1.0 / jnp.sqrt(HIDDEN))),
        "adaln_w2": (jax.random.normal(ks[1], (ADALN_LORA_DIM, 2 * HIDDEN), jnp.float32)
                     * (1.0 / jnp.sqrt(ADALN_LORA_DIM))),
        "linear_w": (jax.random.normal(ks[2], (HIDDEN, P_OUT), jnp.float32)
                     * (1.0 / jnp.sqrt(HIDDEN))),
    }

    T_full, H_full, W_full = T * PATCH_TEMPORAL, H * PATCH_SPATIAL, W * PATCH_SPATIAL
    x = jax.random.normal(ks[3], (T, H, W, B, HIDDEN), jnp.float32)          # 'T H W B D'
    x_t = jax.random.normal(ks[4], (B, OUT_CHANNELS, T_full, H_full, W_full), jnp.float32)
    affline_emb = jax.random.normal(ks[5], (B, HIDDEN), jnp.float32)
    crossattn_emb = jax.random.normal(ks[6], (B, 8, HIDDEN), jnp.float32)    # unused
    rope_emb = jax.random.normal(ks[7], (T * H * W, 1, 1, HIDDEN), jnp.float32)  # unused
    adaln_lora_B_3D = jax.random.normal(ks[8], (B, 3 * HIDDEN), jnp.float32)
    extra_pos_emb = None                                                     # unused
    original_shape = jnp.array([B, OUT_CHANNELS, T_full, H_full, W_full], jnp.int32)
    sigma = jnp.exp(jax.random.normal(ks[9], (B,), jnp.float32))             # positive noise levels

    inputs = (x, x_t, affline_emb, crossattn_emb, rope_emb, adaln_lora_B_3D,
              extra_pos_emb, original_shape, sigma)

    x0_pred, weights = final_layer_forward(params, inputs)
    jax.block_until_ready((x0_pred, weights))

    x0_ref, w_ref = reference_forward(params, inputs)
    assert x0_pred.shape == x_t.shape and weights.shape == (B, 1, 1, 1, 1)
    assert jnp.allclose(x0_pred, x0_ref, atol=1e-3, rtol=1e-3)
    assert jnp.allclose(weights, w_ref, atol=1e-5, rtol=1e-5)

    print("KERNEL_OK")
</pallas_src>

<mosaic_0001>
module attributes {stable_mosaic.version = 11 : i64} {
  func.func @_final_layer_kernel(%arg0: memref<2x32xf32, #tpu.memory_space<vmem>>, %arg1: memref<2x32xf32, #tpu.memory_space<vmem>>, %arg2: memref<2x32xf32, #tpu.memory_space<vmem>>, %arg3: memref<32x16xf32, #tpu.memory_space<vmem>>, %arg4: memref<16x32xf32, #tpu.memory_space<vmem>>, %arg5: memref<16x32xf32, #tpu.memory_space<vmem>>, %arg6: memref<2x64x32xf32, #tpu.memory_space<vmem>>, %arg7: memref<16x32xf32, #tpu.memory_space<vmem>>, %arg8: memref<16x128xf32, #tpu.memory_space<vmem>>, %arg9: memref<1x128xf32, #tpu.memory_space<vmem>>, %arg10: memref<1x128xf32, #tpu.memory_space<vmem>>, %arg11: memref<16x128xf32, #tpu.memory_space<vmem>>) attributes {dimension_semantics = [], scalar_prefetch = 0 : i64, scratch_operands = 0 : i64, tpu.core_type = #tpu.core_type<tc>} {
    %c0 = arith.constant 0 : index
    %c0_0 = arith.constant 0 : index
    %0 = vector.load %arg0[%c0, %c0_0] : memref<2x32xf32, #tpu.memory_space<vmem>>, vector<2x32xf32>
    %1 = arith.negf %0 : vector<2x32xf32>
    %2 = math.exp %1 : vector<2x32xf32>
    %cst = arith.constant 1.000000e+00 : f32
    %3 = vector.broadcast %cst : f32 to vector<2x32xf32>
    %4 = arith.addf %3, %2 : vector<2x32xf32>
    %5 = arith.divf %3, %4 : vector<2x32xf32>
    %6 = arith.mulf %0, %5 : vector<2x32xf32>
    %c0_1 = arith.constant 0 : index
    %c0_2 = arith.constant 0 : index
    %7 = vector.load %arg3[%c0_1, %c0_2] : memref<32x16xf32, #tpu.memory_space<vmem>>, vector<32x16xf32>
    %cst_3 = arith.constant dense<0.000000e+00> : vector<2x16xf32>
    %8 = tpu.matmul %6, %7, %cst_3 {dimension_numbers = #tpu.dot_dimension_numbers<[1], [0], [0], [1], [0, 0, 1, 1], [], []>} : vector<2x32xf32>, vector<32x16xf32>, vector<2x16xf32> -> vector<2x16xf32>
    %c0_4 = arith.constant 0 : index
    %c0_5 = arith.constant 0 : index
    %9 = vector.load %arg4[%c0_4, %c0_5] : memref<16x32xf32, #tpu.memory_space<vmem>>, vector<16x32xf32>
    %cst_6 = arith.constant dense<0.000000e+00> : vector<2x32xf32>
    %10 = tpu.matmul %8, %9, %cst_6 {dimension_numbers = #tpu.dot_dimension_numbers<[1], [0], [0], [1], [0, 0, 1, 1], [], []>} : vector<2x16xf32>, vector<16x32xf32>, vector<2x32xf32> -> vector<2x32xf32>
    %c0_7 = arith.constant 0 : index
    %c0_8 = arith.constant 0 : index
    %11 = vector.load %arg1[%c0_7, %c0_8] : memref<2x32xf32, #tpu.memory_space<vmem>>, vector<2x32xf32>
    %12 = arith.addf %10, %11 : vector<2x32xf32>
    %c0_9 = arith.constant 0 : index
    %c0_10 = arith.constant 0 : index
    %13 = vector.load %arg5[%c0_9, %c0_10] : memref<16x32xf32, #tpu.memory_space<vmem>>, vector<16x32xf32>
    %cst_11 = arith.constant dense<0.000000e+00> : vector<2x32xf32>
    %14 = tpu.matmul %8, %13, %cst_11 {dimension_numbers = #tpu.dot_dimension_numbers<[1], [0], [0], [1], [0, 0, 1, 1], [], []>} : vector<2x16xf32>, vector<16x32xf32>, vector<2x32xf32> -> vector<2x32xf32>
    %c0_12 = arith.constant 0 : index
    %c0_13 = arith.constant 0 : index
    %15 = vector.load %arg2[%c0_12, %c0_13] : memref<2x32xf32, #tpu.memory_space<vmem>>, vector<2x32xf32>
    %16 = arith.addf %14, %15 : vector<2x32xf32>
    %c0_14 = arith.constant 0 : index
    %c0_15 = arith.constant 0 : index
    %c0_16 = arith.constant 0 : index
    %17 = vector.load %arg6[%c0_14, %c0_15, %c0_16] : memref<2x64x32xf32, #tpu.memory_space<vmem>>, vector<2x64x32xf32>
    %cst_17 = arith.constant dense<0.000000e+00> : vector<2x64xf32>
    %18 = vector.multi_reduction <add>, %17, %cst_17 [2] : vector<2x64x32xf32> to vector<2x64xf32>
    %19 = vector.shape_cast %18 : vector<2x64xf32> to vector<2x64x1xf32>
    %cst_18 = arith.constant 3.200000e+01 : f32
    %20 = vector.broadcast %cst_18 : f32 to vector<2x64x1xf32>
    %21 = arith.divf %19, %20 : vector<2x64x1xf32>
    %22 = vector.broadcast %21 : vector<2x64x1xf32> to vector<2x64x32xf32>
    %23 = arith.subf %17, %22 : vector<2x64x32xf32>
    %24 = arith.mulf %23, %23 : vector<2x64x32xf32>
    %cst_19 = arith.constant dense<0.000000e+00> : vector<2x64xf32>
    %25 = vector.multi_reduction <add>, %24, %cst_19 [2] : vector<2x64x32xf32> to vector<2x64xf32>
    %26 = vector.shape_cast %25 : vector<2x64xf32> to vector<2x64x1xf32>
    %cst_20 = arith.constant 3.200000e+01 : f32
    %27 = vector.broadcast %cst_20 : f32 to vector<2x64x1xf32>
    %28 = arith.divf %26, %27 : vector<2x64x1xf32>
    %cst_21 = arith.constant 9.99999997E-7 : f32
    %29 = vector.broadcast %cst_21 : f32 to vector<2x64x1xf32>
    %30 = arith.addf %28, %29 : vector<2x64x1xf32>
    %31 = math.rsqrt %30 : vector<2x64x1xf32>
    %32 = vector.broadcast %31 : vector<2x64x1xf32> to vector<2x64x32xf32>
    %33 = arith.mulf %23, %32 : vector<2x64x32xf32>
    %34 = vector.shape_cast %16 : vector<2x32xf32> to vector<2x1x32xf32>
    %cst_22 = arith.constant 1.000000e+00 : f32
    %35 = vector.broadcast %cst_22 : f32 to vector<2x1x32xf32>
    %36 = arith.addf %35, %34 : vector<2x1x32xf32>
    %37 = vector.broadcast %36 : vector<2x1x32xf32> to vector<2x64x32xf32>
    %38 = arith.mulf %33, %37 : vector<2x64x32xf32>
    %39 = vector.shape_cast %12 : vector<2x32xf32> to vector<2x1x32xf32>
    %40 = vector.broadcast %39 : vector<2x1x32xf32> to vector<2x64x32xf32>
    %41 = arith.addf %38, %40 : vector<2x64x32xf32>
    %42 = vector.shape_cast %41 : vector<2x64x32xf32> to vector<128x32xf32>
    %c0_23 = arith.constant 0 : index
    %c0_24 = arith.constant 0 : index
    %43 = vector.load %arg7[%c0_23, %c0_24] : memref<16x32xf32, #tpu.memory_space<vmem>>, vector<16x32xf32>
    %cst_25 = arith.constant dense<0.000000e+00> : vector<16x128xf32>
    %44 = tpu.matmul %43, %42, %cst_25 {dimension_numbers = #tpu.dot_dimension_numbers<[1], [1], [0], [0], [0, 0, 1, 0], [], []>} : vector<16x32xf32>, vector<128x32xf32>, vector<16x128xf32> -> vector<16x128xf32>
    %c0_26 = arith.constant 0 : index
    %c0_27 = arith.constant 0 : index
    %45 = vector.load %arg9[%c0_26, %c0_27] : memref<1x128xf32, #tpu.memory_space<vmem>>, vector<1x128xf32>
    %c0_28 = arith.constant 0 : index
    %c0_29 = arith.constant 0 : index
    %46 = vector.load %arg8[%c0_28, %c0_29] : memref<16x128xf32, #tpu.memory_space<vmem>>, vector<16x128xf32>
    %47 = vector.broadcast %45 : vector<1x128xf32> to vector<16x128xf32>
    %48 = arith.mulf %47, %46 : vector<16x128xf32>
    %c0_30 = arith.constant 0 : index
    %c0_31 = arith.constant 0 : index
    %49 = vector.load %arg10[%c0_30, %c0_31] : memref<1x128xf32, #tpu.memory_space<vmem>>, vector<1x128xf32>
    %50 = vector.broadcast %49 : vector<1x128xf32> to vector<16x128xf32>
    %51 = arith.mulf %50, %44 : vector<16x128xf32>
    %52 = arith.addf %48, %51 : vector<16x128xf32>
    %c0_32 = arith.constant 0 : index
    %c0_33 = arith.constant 0 : index
    %53 = vector.load %arg11[%c0_32, %c0_33] : memref<16x128xf32, #tpu.memory_space<vmem>>, vector<16x128xf32>
    tpu.vector_store %arg11[%c0_32, %c0_33], %52 {strides = array<i32>} : memref<16x128xf32, #tpu.memory_space<vmem>>, vector<16x128xf32>,
    return
  }
}

</mosaic_0001>

<llo_original>
// kernel: tpu_custom_call.1
$region0: #{tpu_custom_call.1}
  #allocation0 [shape = 'u32[]', space=smem, size = 0x4, offset = 0x4, fixed_abs, tag = 'smem constant byte address 0x4 - core index']
  #allocation1 [shape = 'u32[144,128]{1,0:T(1,128)}', space=vmem, size = 0x12000, scoped, tag = 'internal scratch']
  %s0 = inlined_call_operand.vmem [shape: f32[2,32], index: 0, kind: input, shape index: {}]
  %s1 = inlined_call_operand.vmem [shape: f32[2,32], index: 1, kind: input, shape index: {}]
  %s2 = inlined_call_operand.vmem [shape: f32[2,32], index: 2, kind: input, shape index: {}]
  %s3 = inlined_call_operand.vmem [shape: f32[32,16], index: 3, kind: input, shape index: {}]
  %s4 = inlined_call_operand.vmem [shape: f32[16,32], index: 4, kind: input, shape index: {}]
  %s5 = inlined_call_operand.vmem [shape: f32[16,32], index: 5, kind: input, shape index: {}]
  %s6 = inlined_call_operand.vmem [shape: f32[2,64,32], index: 6, kind: input, shape index: {}]
  %s7 = inlined_call_operand.vmem [shape: f32[16,32], index: 7, kind: input, shape index: {}]
  %s8 = inlined_call_operand.vmem [shape: f32[16,128], index: 8, kind: input, shape index: {}]
  %s9 = inlined_call_operand.vmem [shape: f32[1,128], index: 9, kind: input, shape index: {}]
  %s10 = inlined_call_operand.vmem [shape: f32[1,128], index: 10, kind: input, shape index: {}]
  %s11 = inlined_call_operand.hbm [shape: f32[16,128], index: 11, kind: output, shape index: {}]
  %s12 = sld [smem:[#allocation0]]
  $region54: #{tpu_custom_call.1} parent=0
    _
  %s14 = ssub.s32 1, %s12
  %s15 = scalar_select 0, %s14, %s12
  $region1: #{tpu_custom_call.1} parent=0
    #allocation2 [shape = 'u8[8192]{0}', space=vmem, size = 0x2000, scoped, tag = 'output window, operand 0, single buffered']
    #allocation3 [shape = 's32[1]{0}', space=sflag, size = 0x4, scoped, tag = 'scoped memory for tpu_custom_call.1']
    %16 = vsyncpa [#allocation3], 0
    // Predicated region
    $region2: #{tpu_custom_call.1} parent=1 // pred_check
      _
    $region3: #{tpu_custom_call.1} parent=1 // pred_check_branch
      %18 = sbr.rel (0) target = $region5
    $region4: #{tpu_custom_call.1} parent=1 // pred_region
      _
    $region5: #{tpu_custom_call.1} parent=1 // pred_fallthru
      _
    // Predicated region
    $region6: #{tpu_custom_call.1} parent=1 // pred_check
      _
    $region7: #{tpu_custom_call.1} parent=1 // pred_check_branch
      %20 = sbr.rel (0) target = $region9
    $region8: #{tpu_custom_call.1} parent=1 // pred_region
      _
    $region9: #{tpu_custom_call.1} parent=1 // pred_fallthru
      _
    // Predicated region
    $region10: #{tpu_custom_call.1} parent=1 // pred_check
      _
    $region11: #{tpu_custom_call.1} parent=1 // pred_check_branch
      %22 = sbr.rel (0) target = $region13
    $region12: #{tpu_custom_call.1} parent=1 // pred_region
      _
    $region13: #{tpu_custom_call.1} parent=1 // pred_fallthru
      _
    // Predicated region
    $region14: #{tpu_custom_call.1} parent=1 // pred_check
      _
    $region15: #{tpu_custom_call.1} parent=1 // pred_check_branch
      %24 = sbr.rel (0) target = $region17
    $region16: #{tpu_custom_call.1} parent=1 // pred_region
      _
    $region17: #{tpu_custom_call.1} parent=1 // pred_fallthru
      _
    // Predicated region
    $region18: #{tpu_custom_call.1} parent=1 // pred_check
      _
    $region19: #{tpu_custom_call.1} parent=1 // pred_check_branch
      %26 = sbr.rel (0) target = $region21
    $region20: #{tpu_custom_call.1} parent=1 // pred_region
      _
    $region21: #{tpu_custom_call.1} parent=1 // pred_fallthru
      _
    // Predicated region
    $region22: #{tpu_custom_call.1} parent=1 // pred_check
      _
    $region23: #{tpu_custom_call.1} parent=1 // pred_check_branch
      %28 = sbr.rel (0) target = $region25
    $region24: #{tpu_custom_call.1} parent=1 // pred_region
      _
    $region25: #{tpu_custom_call.1} parent=1 // pred_fallthru
      _
    // Predicated region
    $region26: #{tpu_custom_call.1} parent=1 // pred_check
      _
    $region27: #{tpu_custom_call.1} parent=1 // pred_check_branch
      %30 = sbr.rel (0) target = $region29
    $region28: #{tpu_custom_call.1} parent=1 // pred_region
      _
    $region29: #{tpu_custom_call.1} parent=1 // pred_fallthru
      _
    // Predicated region
    $region30: #{tpu_custom_call.1} parent=1 // pred_check
      _
    $region31: #{tpu_custom_call.1} parent=1 // pred_check_branch
      %32 = sbr.rel (0) target = $region33
    $region32: #{tpu_custom_call.1} parent=1 // pred_region
      _
    $region33: #{tpu_custom_call.1} parent=1 // pred_fallthru
      _
    // Predicated region
    $region34: #{tpu_custom_call.1} parent=1 // pred_check
      _
    $region35: #{tpu_custom_call.1} parent=1 // pred_check_branch
      %34 = sbr.rel (0) target = $region37
    $region36: #{tpu_custom_call.1} parent=1 // pred_region
      _
    $region37: #{tpu_custom_call.1} parent=1 // pred_fallthru
      _
    // Predicated region
    $region38: #{tpu_custom_call.1} parent=1 // pred_check
      _
    $region39: #{tpu_custom_call.1} parent=1 // pred_check_branch
      %36 = sbr.rel (0) target = $region41
    $region40: #{tpu_custom_call.1} parent=1 // pred_region
      _
    $region41: #{tpu_custom_call.1} parent=1 // pred_fallthru
      _
    // Predicated region
    $region42: #{tpu_custom_call.1} parent=1 // pred_check
      _
    $region43: #{tpu_custom_call.1} parent=1 // pred_check_branch
      %38 = sbr.rel (0) target = $region45
    $region44: #{tpu_custom_call.1} parent=1 // pred_region
      _
    $region45: #{tpu_custom_call.1} parent=1 // pred_fallthru
      _
    %v39 = vld [vmem:[%s0] sm:$0x3]
    %v40 = vxor.u32 %v39, 2147483648
    %v41 = vmul.f32 %v40, 1.442695
    %v42 = vpow.pop %v41
    %v43 = vadd.f32 %v42, 1.0
    %v44 = vrcp.pop %v43
    %v45 = vmul.f32 1.0, %v44
    %v46 = vmul.f32 %v39, %v45
    %v47 = vld [vmem:[%s3] sm:$0xff]
    %v48 = vld [vmem:[%s3 + $0x8] sm:$0xff]
    %v49 = vld [vmem:[%s3 + $0x10] sm:$0xff]
    %v50 = vld [vmem:[%s3 + $0x18] sm:$0xff]
    %vm51 = vcmask 261120
    %v53 = vsel %vm51, %v46, 0
    %55 = vmatprep.subr.mxu0 0.0
    %56 = vmatpush1.msra.mxu0 0.0
    %57 = vmatprep.subr.mxu0 0.0
    %58 = vmatpush1.msra.mxu0 0.0
    %59 = vmatprep.subr.mxu0 0.0
    %60 = vmatpush1.msra.mxu0 0.0
    %61 = vmatprep.subr.mxu0 0.0
    %62 = vmatpush1.msra.mxu0 0.0
    %63 = vmatprep.subr.mxu0 0.0
    %64 = vmatpush1.msra.mxu0 0.0
    %65 = vmatprep.subr.mxu0 0.0
    %66 = vmatpush1.msra.mxu0 0.0
    %67 = vmatprep.subr.mxu0 0.0
    %68 = vmatpush1.msra.mxu0 0.0
    %69 = vmatprep.subr.mxu0 0.0
    %70 = vmatpush1.msra.mxu0 0.0
    %71 = vmatprep.subr.mxu0 0.0
    %72 = vmatpush1.msra.mxu0 0.0
    %73 = vmatprep.subr.mxu0 0.0
    %74 = vmatpush1.msra.mxu0 0.0
    %75 = vmatprep.subr.mxu0 0.0
    %76 = vmatpush1.msra.mxu0 0.0
    %77 = vmatprep.subr.mxu0 0.0
    %78 = vmatpush1.msra.mxu0 0.0
    %79 = vmatprep.subr.mxu0 0.0
    %80 = vmatpush1.msra.mxu0 %v50
    %81 = vmatprep.subr.mxu0 0.0
    %82 = vmatpush1.msra.mxu0 %v49
    %83 = vmatprep.subr.mxu0 0.0
    %84 = vmatpush1.msra.mxu0 %v48
    %85 = vmatprep.subr.mxu0 0.0
    %86 = vmatpush1.msra.mxu0 %v47
    %87 = vmatprep.subr.mxu0 0.0
    %88 = vmatpush2.msra.mxu0 0.0
    %89 = vmatprep.subr.mxu0 0.0
    %90 = vmatpush2.msra.mxu0 0.0
    %91 = vmatprep.subr.mxu0 0.0
    %92 = vmatpush2.msra.mxu0 0.0
    %93 = vmatprep.subr.mxu0 0.0
    %94 = vmatpush2.msra.mxu0 0.0
    %95 = vmatprep.subr.mxu0 0.0
    %96 = vmatpush2.msra.mxu0 0.0
    %97 = vmatprep.subr.mxu0 0.0
    %98 = vmatpush2.msra.mxu0 0.0
    %99 = vmatprep.subr.mxu0 0.0
    %100 = vmatpush2.msra.mxu0 0.0
    %101 = vmatprep.subr.mxu0 0.0
    %102 = vmatpush2.msra.mxu0 0.0
    %103 = vmatprep.subr.mxu0 0.0
    %104 = vmatpush2.msra.mxu0 0.0
    %105 = vmatprep.subr.mxu0 0.0
    %106 = vmatpush2.msra.mxu0 0.0
    %107 = vmatprep.subr.mxu0 0.0
    %108 = vmatpush2.msra.mxu0 0.0
    %109 = vmatprep.subr.mxu0 0.0
    %110 = vmatpush2.msra.mxu0 0.0
    %111 = vmatprep.subr.mxu0 0.0
    %112 = vmatpush2.msra.mxu0 0.0
    %113 = vmatprep.subr.mxu0 0.0
    %114 = vmatpush2.msra.mxu0 0.0
    %115 = vmatprep.subr.mxu0 0.0
    %116 = vmatpush2.msra.mxu0 0.0
    %117 = vmatprep.subr.mxu0 0.0
    %118 = vmatpush2.msra.mxu0 0.0
    %119 = vmatprep.mubr.f32.mxu0 0.0
    %120 = vmatmul.mubr.f32.gmra.mxu0 %v53
    %v121 = vpop.f32.mrf.mxu0
    %v122 = vadd.f32 0.0, %v121
    %v123 = vpop.f32.mrf.mxu0
    %124 = vdwg.mxu0
    %v125 = vld [vmem:[%s4] sm:$0xff]
    %v126 = vld [vmem:[%s4 + $0x8] sm:$0xff]
    %v127 = vld [vmem:[%s1] sm:$0x3]
    %vm128 = vcmask 130048
    %v130 = vsel %vm128, %v122, 0
    %132 = vmatprep.subr.mxu0 0.0
    %133 = vmatpush1.msra.mxu0 0.0
    %134 = vmatprep.subr.mxu0 0.0
    %135 = vmatpush1.msra.mxu0 0.0
    %136 = vmatprep.subr.mxu0 0.0
    %137 = vmatpush1.msra.mxu0 0.0
    %138 = vmatprep.subr.mxu0 0.0
    %139 = vmatpush1.msra.mxu0 0.0
    %140 = vmatprep.subr.mxu0 0.0
    %141 = vmatpush1.msra.mxu0 0.0
    %142 = vmatprep.subr.mxu0 0.0
    %143 = vmatpush1.msra.mxu0 0.0
    %144 = vmatprep.subr.mxu0 0.0
    %145 = vmatpush1.msra.mxu0 0.0
    %146 = vmatprep.subr.mxu0 0.0
    %147 = vmatpush1.msra.mxu0 0.0
    %148 = vmatprep.subr.mxu0 0.0
    %149 = vmatpush1.msra.mxu0 0.0
    %150 = vmatprep.subr.mxu0 0.0
    %151 = vmatpush1.msra.mxu0 0.0
    %152 = vmatprep.subr.mxu0 0.0
    %153 = vmatpush1.msra.mxu0 0.0
    %154 = vmatprep.subr.mxu0 0.0
    %155 = vmatpush1.msra.mxu0 0.0
    %156 = vmatprep.subr.mxu0 0.0
    %157 = vmatpush1.msra.mxu0 0.0
    %158 = vmatprep.subr.mxu0 0.0
    %159 = vmatpush1.msra.mxu0 0.0
    %160 = vmatprep.subr.mxu0 0.0
    %161 = vmatpush1.msra.mxu0 %v126
    %162 = vmatprep.subr.mxu0 0.0
    %163 = vmatpush1.msra.mxu0 %v125
    %164 = vmatprep.subr.mxu0 0.0
    %165 = vmatpush2.msra.mxu0 0.0
    %166 = vmatprep.subr.mxu0 0.0
    %167 = vmatpush2.msra.mxu0 0.0
    %168 = vmatprep.subr.mxu0 0.0
    %169 = vmatpush2.msra.mxu0 0.0
    %170 = vmatprep.subr.mxu0 0.0
    %171 = vmatpush2.msra.mxu0 0.0
    %172 = vmatprep.subr.mxu0 0.0
    %173 = vmatpush2.msra.mxu0 0.0
    %174 = vmatprep.subr.mxu0 0.0
    %175 = vmatpush2.msra.mxu0 0.0
    %176 = vmatprep.subr.mxu0 0.0
    %177 = vmatpush2.msra.mxu0 0.0
    %178 = vmatprep.subr.mxu0 0.0
    %179 = vmatpush2.msra.mxu0 0.0
    %180 = vmatprep.subr.mxu0 0.0
    %181 = vmatpush2.msra.mxu0 0.0
    %182 = vmatprep.subr.mxu0 0.0
    %183 = vmatpush2.msra.mxu0 0.0
    %184 = vmatprep.subr.mxu0 0.0
    %185 = vmatpush2.msra.mxu0 0.0
    %186 = vmatprep.subr.mxu0 0.0
    %187 = vmatpush2.msra.mxu0 0.0
    %188 = vmatprep.subr.mxu0 0.0
    %189 = vmatpush2.msra.mxu0 0.0
    %190 = vmatprep.subr.mxu0 0.0
    %191 = vmatpush2.msra.mxu0 0.0
    %192 = vmatprep.subr.mxu0 0.0
    %193 = vmatpush2.msra.mxu0 0.0
    %194 = vmatprep.subr.mxu0 0.0
    %195 = vmatpush2.msra.mxu0 0.0
    %196 = vmatprep.mubr.f32.mxu0 0.0
    %197 = vmatmul.mubr.f32.gmra.mxu0 %v130
    %v198 = vpop.f32.mrf.mxu0
    %v199 = vadd.f32 %v127, %v198
    %v200 = vpop.f32.mrf.mxu0
    %201 = vdwg.mxu0
    %v202 = vld [vmem:[%s5] sm:$0xff]
    %v203 = vld [vmem:[%s5 + $0x8] sm:$0xff]
    %v204 = vld [vmem:[%s2] sm:$0x3]
    %205 = vmatprep.subr.mxu0 0.0
    %206 = vmatpush1.msra.mxu0 0.0
    %207 = vmatprep.subr.mxu0 0.0
    %208 = vmatpush1.msra.mxu0 0.0
    %209 = vmatprep.subr.mxu0 0.0
    %210 = vmatpush1.msra.mxu0 0.0
    %211 = vmatprep.subr.mxu0 0.0
    %212 = vmatpush1.msra.mxu0 0.0
    %213 = vmatprep.subr.mxu0 0.0
    %214 = vmatpush1.msra.mxu0 0.0
    %215 = vmatprep.subr.mxu0 0.0
    %216 = vmatpush1.msra.mxu0 0.0
    %217 = vmatprep.subr.mxu0 0.0
    %218 = vmatpush1.msra.mxu0 0.0
    %219 = vmatprep.subr.mxu0 0.0
    %220 = vmatpush1.msra.mxu0 0.0
    %221 = vmatprep.subr.mxu0 0.0
    %222 = vmatpush1.msra.mxu0 0.0
    %223 = vmatprep.subr.mxu0 0.0
    %224 = vmatpush1.msra.mxu0 0.0
    %225 = vmatprep.subr.mxu0 0.0
    %226 = vmatpush1.msra.mxu0 0.0
    %227 = vmatprep.subr.mxu0 0.0
    %228 = vmatpush1.msra.mxu0 0.0
    %229 = vmatprep.subr.mxu0 0.0
    %230 = vmatpush1.msra.mxu0 0.0
    %231 = vmatprep.subr.mxu0 0.0
    %232 = vmatpush1.msra.mxu0 0.0
    %233 = vmatprep.subr.mxu0 0.0
    %234 = vmatpush1.msra.mxu0 %v203
    %235 = vmatprep.subr.mxu0 0.0
    %236 = vmatpush1.msra.mxu0 %v202
    %237 = vmatprep.subr.mxu0 0.0
    %238 = vmatpush2.msra.mxu0 0.0
    %239 = vmatprep.subr.mxu0 0.0
    %240 = vmatpush2.msra.mxu0 0.0
    %241 = vmatprep.subr.mxu0 0.0
    %242 = vmatpush2.msra.mxu0 0.0
    %243 = vmatprep.subr.mxu0 0.0
    %244 = vmatpush2.msra.mxu0 0.0
    %245 = vmatprep.subr.mxu0 0.0
    %246 = vmatpush2.msra.mxu0 0.0
    %247 = vmatprep.subr.mxu0 0.0
    %248 = vmatpush2.msra.mxu0 0.0
    %249 = vmatprep.subr.mxu0 0.0
    %250 = vmatpush2.msra.mxu0 0.0
    %251 = vmatprep.subr.mxu0 0.0
    %252 = vmatpush2.msra.mxu0 0.0
    %253 = vmatprep.subr.mxu0 0.0
    %254 = vmatpush2.msra.mxu0 0.0
    %255 = vmatprep.subr.mxu0 0.0
    %256 = vmatpush2.msra.mxu0 0.0
    %257 = vmatprep.subr.mxu0 0.0
    %258 = vmatpush2.msra.mxu0 0.0
    %259 = vmatprep.subr.mxu0 0.0
    %260 = vmatpush2.msra.mxu0 0.0
    %261 = vmatprep.subr.mxu0 0.0
    %262 = vmatpush2.msra.mxu0 0.0
    %263 = vmatprep.subr.mxu0 0.0
    %264 = vmatpush2.msra.mxu0 0.0
    %265 = vmatprep.subr.mxu0 0.0
    %266 = vmatpush2.msra.mxu0 0.0
    %267 = vmatprep.subr.mxu0 0.0
    %268 = vmatpush2.msra.mxu0 0.0
    %269 = vmatprep.mubr.f32.mxu0 0.0
    %270 = vmatmul.mubr.f32.gmra.mxu0 %v130
    %v271 = vpop.f32.mrf.mxu0
    %v272 = vadd.f32 %v204, %v271
    %v273 = vpop.f32.mrf.mxu0
    %274 = vdwg.mxu0
    %v275 = vld [vmem:[%s6] sm:$0xff]
    %v276 = vld [vmem:[%s6 + $0x8] sm:$0xff]
    %v277 = vld [vmem:[%s6 + $0x10] sm:$0xff]
    %v278 = vld [vmem:[%s6 + $0x18] sm:$0xff]
    %v279 = vld [vmem:[%s6 + $0x20] sm:$0xff]
    %v280 = vld [vmem:[%s6 + $0x28] sm:$0xff]
    %v281 = vld [vmem:[%s6 + $0x30] sm:$0xff]
    %v282 = vld [vmem:[%s6 + $0x38] sm:$0xff]
    %v283 = vld [vmem:[%s6 + $0x40] sm:$0xff]
    %v284 = vld [vmem:[%s6 + $0x48] sm:$0xff]
    %v285 = vld [vmem:[%s6 + $0x50] sm:$0xff]
    %v286 = vld [vmem:[%s6 + $0x58] sm:$0xff]
    %v287 = vld [vmem:[%s6 + $0x60] sm:$0xff]
    %v288 = vld [vmem:[%s6 + $0x68] sm:$0xff]
    %v289 = vld [vmem:[%s6 + $0x70] sm:$0xff]
    %v290 = vld [vmem:[%s6 + $0x78] sm:$0xff]
    %v291 = vsel %vm51, %v275, 0.0
    %292 = vadd.xlane.f32.xlu0 %v291
    %v293 = vpop.xlane.xlu0 %292
    %v294 = vsel %vm51, %v276, 0.0
    %295 = vadd.xlane.f32.xlu0 %v294
    %v296 = vpop.xlane.xlu0 %295
    %v297 = vsel %vm51, %v277, 0.0
    %298 = vadd.xlane.f32.xlu0 %v297
    %v299 = vpop.xlane.xlu0 %298
    %v300 = vsel %vm51, %v278, 0.0
    %301 = vadd.xlane.f32.xlu0 %v300
    %v302 = vpop.xlane.xlu0 %301
    %v303 = vsel %vm51, %v279, 0.0
    %304 = vadd.xlane.f32.xlu0 %v303
    %v305 = vpop.xlane.xlu0 %304
    %v306 = vsel %vm51, %v280, 0.0
    %307 = vadd.xlane.f32.xlu0 %v306
    %v308 = vpop.xlane.xlu0 %307
    %v309 = vsel %vm51, %v281, 0.0
    %310 = vadd.xlane.f32.xlu0 %v309
    %v311 = vpop.xlane.xlu0 %310
    %v312 = vsel %vm51, %v282, 0.0
    %313 = vadd.xlane.f32.xlu0 %v312
    %v314 = vpop.xlane.xlu0 %313
    %v315 = vsel %vm51, %v283, 0.0
    %316 = vadd.xlane.f32.xlu0 %v315
    %v317 = vpop.xlane.xlu0 %316
    %v318 = vsel %vm51, %v284, 0.0
    %319 = vadd.xlane.f32.xlu0 %v318
    %v320 = vpop.xlane.xlu0 %319
    %v321 = vsel %vm51, %v285, 0.0
    %322 = vadd.xlane.f32.xlu0 %v321
    %v323 = vpop.xlane.xlu0 %322
    %v324 = vsel %vm51, %v286, 0.0
    %325 = vadd.xlane.f32.xlu0 %v324
    %v326 = vpop.xlane.xlu0 %325
    %v327 = vsel %vm51, %v287, 0.0
    %328 = vadd.xlane.f32.xlu0 %v327
    %v329 = vpop.xlane.xlu0 %328
    %v330 = vsel %vm51, %v288, 0.0
    %331 = vadd.xlane.f32.xlu0 %v330
    %v332 = vpop.xlane.xlu0 %331
    %v333 = vsel %vm51, %v289, 0.0
    %334 = vadd.xlane.f32.xlu0 %v333
    %v335 = vpop.xlane.xlu0 %334
    %v336 = vsel %vm51, %v290, 0.0
    %337 = vadd.xlane.f32.xlu0 %v336
    %v338 = vpop.xlane.xlu0 %337
    %v339 = vrcp.pop 32.0
    %v340 = vmul.f32 %v293, %v339
    %v341 = vmul.f32 %v296, %v339
    %v342 = vmul.f32 %v299, %v339
    %v343 = vmul.f32 %v302, %v339
    %v344 = vmul.f32 %v305, %v339
    %v345 = vmul.f32 %v308, %v339
    %v346 = vmul.f32 %v311, %v339
    %v347 = vmul.f32 %v314, %v339
    %v348 = vmul.f32 %v317, %v339
    %v349 = vmul.f32 %v320, %v339
    %v350 = vmul.f32 %v323, %v339
    %v351 = vmul.f32 %v326, %v339
    %v352 = vmul.f32 %v329, %v339
    %v353 = vmul.f32 %v332, %v339
    %v354 = vmul.f32 %v335, %v339
    %v355 = vmul.f32 %v338, %v339
    %v356 = vsub.f32 %v275, %v340
    %v357 = vsub.f32 %v276, %v341
    %v358 = vsub.f32 %v277, %v342
    %v359 = vsub.f32 %v278, %v343
    %v360 = vsub.f32 %v279, %v344
    %v361 = vsub.f32 %v280, %v345
    %v362 = vsub.f32 %v281, %v346
    %v363 = vsub.f32 %v282, %v347
    %v364 = vsub.f32 %v283, %v348
    %v365 = vsub.f32 %v284, %v349
    %v366 = vsub.f32 %v285, %v350
    %v367 = vsub.f32 %v286, %v351
    %v368 = vsub.f32 %v287, %v352
    %v369 = vsub.f32 %v288, %v353
    %v370 = vsub.f32 %v289, %v354
    %v371 = vsub.f32 %v290, %v355
    %v372 = vmul.f32 %v356, %v356
    %v373 = vmul.f32 %v357, %v357
    %v374 = vmul.f32 %v358, %v358
    %v375 = vmul.f32 %v359, %v359
    %v376 = vmul.f32 %v360, %v360
    %v377 = vmul.f32 %v361, %v361
    %v378 = vmul.f32 %v362, %v362
    %v379 = vmul.f32 %v363, %v363
    %v380 = vmul.f32 %v364, %v364
    %v381 = vmul.f32 %v365, %v365
    %v382 = vmul.f32 %v366, %v366
    %v383 = vmul.f32 %v367, %v367
    %v384 = vmul.f32 %v368, %v368
    %v385 = vmul.f32 %v369, %v369
    %v386 = vmul.f32 %v370, %v370
    %v387 = vmul.f32 %v371, %v371
    %v388 = vsel %vm51, %v372, 0.0
    %389 = vadd.xlane.f32.xlu0 %v388
    %v390 = vpop.xlane.xlu0 %389
    %v391 = vsel %vm51, %v373, 0.0
    %392 = vadd.xlane.f32.xlu0 %v391
    %v393 = vpop.xlane.xlu0 %392
    %v394 = vsel %vm51, %v374, 0.0
    %395 = vadd.xlane.f32.xlu0 %v394
    %v396 = vpop.xlane.xlu0 %395
    %v397 = vsel %vm51, %v375, 0.0
    %398 = vadd.xlane.f32.xlu0 %v397
    %v399 = vpop.xlane.xlu0 %398
    %v400 = vsel %vm51, %v376, 0.0
    %401 = vadd.xlane.f32.xlu0 %v400
    %v402 = vpop.xlane.xlu0 %401
    %v403 = vsel %vm51, %v377, 0.0
    %404 = vadd.xlane.f32.xlu0 %v403
    %v405 = vpop.xlane.xlu0 %404
    %v406 = vsel %vm51, %v378, 0.0
    %407 = vadd.xlane.f32.xlu0 %v406
    %v408 = vpop.xlane.xlu0 %407
    %v409 = vsel %vm51, %v379, 0.0
    %410 = vadd.xlane.f32.xlu0 %v409
    %v411 = vpop.xlane.xlu0 %410
    %v412 = vsel %vm51, %v380, 0.0
    %413 = vadd.xlane.f32.xlu0 %v412
    %v414 = vpop.xlane.xlu0 %413
    %v415 = vsel %vm51, %v381, 0.0
    %416 = vadd.xlane.f32.xlu0 %v415
    %v417 = vpop.xlane.xlu0 %416
    %v418 = vsel %vm51, %v382, 0.0
    %419 = vadd.xlane.f32.xlu0 %v418
    %v420 = vpop.xlane.xlu0 %419
    %v421 = vsel %vm51, %v383, 0.0
    %422 = vadd.xlane.f32.xlu0 %v421
    %v423 = vpop.xlane.xlu0 %422
    %v424 = vsel %vm51, %v384, 0.0
    %425 = vadd.xlane.f32.xlu0 %v424
    %v426 = vpop.xlane.xlu0 %425
    %v427 = vsel %vm51, %v385, 0.0
    %428 = vadd.xlane.f32.xlu0 %v427
    %v429 = vpop.xlane.xlu0 %428
    %v430 = vsel %vm51, %v386, 0.0
    %431 = vadd.xlane.f32.xlu0 %v430
    %v432 = vpop.xlane.xlu0 %431
    %v433 = vsel %vm51, %v387, 0.0
    %434 = vadd.xlane.f32.xlu0 %v433
    %v435 = vpop.xlane.xlu0 %434
    %v436 = vmul.f32 %v390, %v339
    %v437 = vmul.f32 %v393, %v339
    %v438 = vmul.f32 %v396, %v339
    %v439 = vmul.f32 %v399, %v339
    %v440 = vmul.f32 %v402, %v339
    %v441 = vmul.f32 %v405, %v339
    %v442 = vmul.f32 %v408, %v339
    %v443 = vmul.f32 %v411, %v339
    %v444 = vmul.f32 %v414, %v339
    %v445 = vmul.f32 %v417, %v339
    %v446 = vmul.f32 %v420, %v339
    %v447 = vmul.f32 %v423, %v339
    %v448 = vmul.f32 %v426, %v339
    %v449 = vmul.f32 %v429, %v339
    %v450 = vmul.f32 %v432, %v339
    %v451 = vmul.f32 %v435, %v339
    %v452 = vadd.f32 %v436, 1e-06
    %v453 = vadd.f32 %v437, 1e-06
    %v454 = vadd.f32 %v438, 1e-06
    %v455 = vadd.f32 %v439, 1e-06
    %v456 = vadd.f32 %v440, 1e-06
    %v457 = vadd.f32 %v441, 1e-06
    %v458 = vadd.f32 %v442, 1e-06
    %v459 = vadd.f32 %v443, 1e-06
    %v460 = vadd.f32 %v444, 1e-06
    %v461 = vadd.f32 %v445, 1e-06
    %v462 = vadd.f32 %v446, 1e-06
    %v463 = vadd.f32 %v447, 1e-06
    %v464 = vadd.f32 %v448, 1e-06
    %v465 = vadd.f32 %v449, 1e-06
    %v466 = vadd.f32 %v450, 1e-06
    %v467 = vadd.f32 %v451, 1e-06
    %v468 = vrsqrt.pop %v452
    %v469 = vrsqrt.pop %v453
    %v470 = vrsqrt.pop %v454
    %v471 = vrsqrt.pop %v455
    %v472 = vrsqrt.pop %v456
    %v473 = vrsqrt.pop %v457
    %v474 = vrsqrt.pop %v458
    %v475 = vrsqrt.pop %v459
    %v476 = vrsqrt.pop %v460
    %v477 = vrsqrt.pop %v461
    %v478 = vrsqrt.pop %v462
    %v479 = vrsqrt.pop %v463
    %v480 = vrsqrt.pop %v464
    %v481 = vrsqrt.pop %v465
    %v482 = vrsqrt.pop %v466
    %v483 = vrsqrt.pop %v467
    %v484 = vmul.f32 %v356, %v468
    %v485 = vmul.f32 %v357, %v469
    %v486 = vmul.f32 %v358, %v470
    %v487 = vmul.f32 %v359, %v471
    %v488 = vmul.f32 %v360, %v472
    %v489 = vmul.f32 %v361, %v473
    %v490 = vmul.f32 %v362, %v474
    %v491 = vmul.f32 %v363, %v475
    %v492 = vmul.f32 %v364, %v476
    %v493 = vmul.f32 %v365, %v477
    %v494 = vmul.f32 %v366, %v478
    %v495 = vmul.f32 %v367, %v479
    %v496 = vmul.f32 %v368, %v480
    %v497 = vmul.f32 %v369, %v481
    %v498 = vmul.f32 %v370, %v482
    %v499 = vmul.f32 %v371, %v483
    %v502 = vunpack.c.l.s4 1966171168
    %v503 = vunpack.c.0.s8 %v502
    %v504 = vlaneseq
    %v505 = vshrl.u32 %v504, 7
    %v506 = vsub.s32 %v503, %v505
    %v507 = vrot.slane %v272, %v506
    %v508 = vcombine.high %v507, %v507
    %v510 = vunpack.c.l.s4 1966171168
    %v511 = vunpack.c.0.s8 %v510
    %v512 = vlaneseq
    %v513 = vshrl.u32 %v512, 7
    %v514 = vsub.s32 %v511, %v513
    %v515 = vrot.slane %v507, %v514
    %v517 = vunpack.c.l.s4 1966171168
    %v518 = vunpack.c.0.s8 %v517
    %v519 = vlaneseq
    %v520 = vshrl.u32 %v519, 7
    %v521 = vsub.s32 %v518, %v520
    %v522 = vrot.slane %v508, %v521
    %v525 = vadd.f32 %v515, 1.0
    %v526 = vadd.f32 %v522, 1.0
    %v529 = vlaneseq
    %v530 = vshrl.u32 %v529, 7
    %v531 = vsub.s32 0, %v530
    %v532 = vrot.slane %v525, %v531
    %v533 = vlaneseq
    %v534 = vshrl.u32 %v533, 7
    %v535 = vsub.s32 0, %v534
    %v536 = vrot.slane %v526, %v535
    %v539 = vmul.f32 %v484, %v532
    %v540 = vmul.f32 %v485, %v532
    %v541 = vmul.f32 %v486, %v532
    %v542 = vmul.f32 %v487, %v532
    %v543 = vmul.f32 %v488, %v532
    %v544 = vmul.f32 %v489, %v532
    %v545 = vmul.f32 %v490, %v532
    %v546 = vmul.f32 %v491, %v532
    %v547 = vmul.f32 %v492, %v536
    %v548 = vmul.f32 %v493, %v536
    %v549 = vmul.f32 %v494, %v536
    %v550 = vmul.f32 %v495, %v536
    %v551 = vmul.f32 %v496, %v536
    %v552 = vmul.f32 %v497, %v536
    %v553 = vmul.f32 %v498, %v536
    %v554 = vmul.f32 %v499, %v536
    %v557 = vunpack.c.l.s4 1966171168
    %v558 = vunpack.c.0.s8 %v557
    %v559 = vlaneseq
    %v560 = vshrl.u32 %v559, 7
    %v561 = vsub.s32 %v558, %v560
    %v562 = vrot.slane %v199, %v561
    %v563 = vcombine.high %v562, %v562
    %v565 = vunpack.c.l.s4 1966171168
    %v566 = vunpack.c.0.s8 %v565
    %v567 = vlaneseq
    %v568 = vshrl.u32 %v567, 7
    %v569 = vsub.s32 %v566, %v568
    %v570 = vrot.slane %v562, %v569
    %v572 = vunpack.c.l.s4 1966171168
    %v573 = vunpack.c.0.s8 %v572
    %v574 = vlaneseq
    %v575 = vshrl.u32 %v574, 7
    %v576 = vsub.s32 %v573, %v575
    %v577 = vrot.slane %v563, %v576
    %v578 = vlaneseq
    %v579 = vshrl.u32 %v578, 7
    %v580 = vsub.s32 0, %v579
    %v581 = vrot.slane %v570, %v580
    %v582 = vlaneseq
    %v583 = vshrl.u32 %v582, 7
    %v584 = vsub.s32 0, %v583
    %v585 = vrot.slane %v577, %v584
    %v588 = vadd.f32 %v539, %v581
    %v589 = vadd.f32 %v540, %v581
    %v590 = vadd.f32 %v541, %v581
    %v591 = vadd.f32 %v542, %v581
    %v592 = vadd.f32 %v543, %v581
    %v593 = vadd.f32 %v544, %v581
    %v594 = vadd.f32 %v545, %v581
    %v595 = vadd.f32 %v546, %v581
    %v596 = vadd.f32 %v547, %v585
    %v597 = vadd.f32 %v548, %v585
    %v598 = vadd.f32 %v549, %v585
    %v599 = vadd.f32 %v550, %v585
    %v600 = vadd.f32 %v551, %v585
    %v601 = vadd.f32 %v552, %v585
    %v602 = vadd.f32 %v553, %v585
    %v603 = vadd.f32 %v554, %v585
    %v604 = vld [vmem:[%s7] sm:$0xff]
    %v605 = vld [vmem:[%s7 + $0x8] sm:$0xff]
    %v607 = vsel %vm51, %v604, 0
    %v610 = vsel %vm51, %v605, 0
    %v613 = vsel %vm51, %v588, 0
    %v616 = vsel %vm51, %v589, 0
    %v619 = vsel %vm51, %v590, 0
    %v622 = vsel %vm51, %v591, 0
    %v625 = vsel %vm51, %v592, 0
    %v628 = vsel %vm51, %v593, 0
    %v631 = vsel %vm51, %v594, 0
    %v634 = vsel %vm51, %v595, 0
    %v637 = vsel %vm51, %v596, 0
    %v640 = vsel %vm51, %v597, 0
    %v643 = vsel %vm51, %v598, 0
    %v646 = vsel %vm51, %v599, 0
    %v649 = vsel %vm51, %v600, 0
    %v652 = vsel %vm51, %v601, 0
    %v655 = vsel %vm51, %v602, 0
    %v658 = vsel %vm51, %v603, 0
    %660 = vmatprep.subr.mxu0 0.0
    %661 = vmatpush1.xpose.msra.mxu0 %v658
    %662 = vmatprep.subr.mxu0 0.0
    %663 = vmatpush1.xpose.msra.mxu0 %v655
    %664 = vmatprep.subr.mxu0 0.0
    %665 = vmatpush1.xpose.msra.mxu0 %v652
    %666 = vmatprep.subr.mxu0 0.0
    %667 = vmatpush1.xpose.msra.mxu0 %v649
    %668 = vmatprep.subr.mxu0 0.0
    %669 = vmatpush1.xpose.msra.mxu0 %v646
    %670 = vmatprep.subr.mxu0 0.0
    %671 = vmatpush1.xpose.msra.mxu0 %v643
    %672 = vmatprep.subr.mxu0 0.0
    %673 = vmatpush1.xpose.msra.mxu0 %v640
    %674 = vmatprep.subr.mxu0 0.0
    %675 = vmatpush1.xpose.msra.mxu0 %v637
    %676 = vmatprep.subr.mxu0 0.0
    %677 = vmatpush1.xpose.msra.mxu0 %v634
    %678 = vmatprep.subr.mxu0 0.0
    %679 = vmatpush1.xpose.msra.mxu0 %v631
    %680 = vmatprep.subr.mxu0 0.0
    %681 = vmatpush1.xpose.msra.mxu0 %v628
    %682 = vmatprep.subr.mxu0 0.0
    %683 = vmatpush1.xpose.msra.mxu0 %v625
    %684 = vmatprep.subr.mxu0 0.0
    %685 = vmatpush1.xpose.msra.mxu0 %v622
    %686 = vmatprep.subr.mxu0 0.0
    %687 = vmatpush1.xpose.msra.mxu0 %v619
    %688 = vmatprep.subr.mxu0 0.0
    %689 = vmatpush1.xpose.msra.mxu0 %v616
    %690 = vmatprep.subr.mxu0 0.0
    %691 = vmatpush1.xpose.msra.mxu0 %v613
    %692 = vmatprep.subr.mxu0 0.0
    %693 = vmatpush2.xpose.msra.mxu0 0.0
    %694 = vmatprep.subr.mxu0 0.0
    %695 = vmatpush2.xpose.msra.mxu0 0.0
    %696 = vmatprep.subr.mxu0 0.0
    %697 = vmatpush2.xpose.msra.mxu0 0.0
    %698 = vmatprep.subr.mxu0 0.0
    %699 = vmatpush2.xpose.msra.mxu0 0.0
    %700 = vmatprep.subr.mxu0 0.0
    %701 = vmatpush2.xpose.msra.mxu0 0.0
    %702 = vmatprep.subr.mxu0 0.0
    %703 = vmatpush2.xpose.msra.mxu0 0.0
    %704 = vmatprep.subr.mxu0 0.0
    %705 = vmatpush2.xpose.msra.mxu0 0.0
    %706 = vmatprep.subr.mxu0 0.0
    %707 = vmatpush2.xpose.msra.mxu0 0.0
    %708 = vmatprep.subr.mxu0 0.0
    %709 = vmatpush2.xpose.msra.mxu0 0.0
    %710 = vmatprep.subr.mxu0 0.0
    %711 = vmatpush2.xpose.msra.mxu0 0.0
    %712 = vmatprep.subr.mxu0 0.0
    %713 = vmatpush2.xpose.msra.mxu0 0.0
    %714 = vmatprep.subr.mxu0 0.0
    %715 = vmatpush2.xpose.msra.mxu0 0.0
    %716 = vmatprep.subr.mxu0 0.0
    %717 = vmatpush2.xpose.msra.mxu0 0.0
    %718 = vmatprep.subr.mxu0 0.0
    %719 = vmatpush2.xpose.msra.mxu0 0.0
    %720 = vmatprep.subr.mxu0 0.0
    %721 = vmatpush2.xpose.msra.mxu0 0.0
    %722 = vmatprep.subr.mxu0 0.0
    %723 = vmatpush2.xpose.msra.mxu0 0.0
    %724 = vmatprep.mubr.f32.mxu0 0.0
    %725 = vmatmul.mubr.f32.gmra.mxu0 %v607
    %v726 = vpop.f32.mrf.mxu0
    %v727 = vadd.f32 0.0, %v726
    %v728 = vpop.f32.mrf.mxu0
    %729 = vmatprep.mubr.f32.mxu0 0.0
    %730 = vmatmul.mubr.f32.gmra.mxu0 %v610
    %v731 = vpop.f32.mrf.mxu0
    %v732 = vadd.f32 0.0, %v731
    %v733 = vpop.f32.mrf.mxu0
    %734 = vdwg.mxu0
    %v735 = vld [vmem:[%s9] sm:$0x1]
    %v736 = vld [vmem:[%s8] sm:$0xff]
    %v737 = vld [vmem:[%s8 + $0x8] sm:$0xff]
    %v739 = vlaneseq
    %v740 = vshrl.u32 %v739, 7
    %v741 = vsub.s32 0, %v740
    %v742 = vrot.slane %v735, %v741
    %v744 = vmul.f32 %v742, %v736
    %v745 = vmul.f32 %v742, %v737
    %v746 = vld [vmem:[%s10] sm:$0x1]
    %v748 = vlaneseq
    %v749 = vshrl.u32 %v748, 7
    %v750 = vsub.s32 0, %v749
    %v751 = vrot.slane %v746, %v750
    %v753 = vmul.f32 %v751, %v727
    %v754 = vmul.f32 %v751, %v732
    %v755 = vadd.f32 %v744, %v753
    %v756 = vadd.f32 %v745, %v754
    %757 = vst [vmem:[#allocation2] sm:$0xff] %v755
    %758 = vst [vmem:[#allocation2 + $0x8] sm:$0xff] %v756
    // Predicated region
    $region46: #{tpu_custom_call.1} parent=1 // pred_check
      _
    $region47: #{tpu_custom_call.1} parent=1 // pred_check_branch
      %760 = sbr.rel (0) target = $region49
    $region48: #{tpu_custom_call.1} parent=1 // pred_region
      %s762 = ssub.s32 256, 256
      %763 = vsyncadd [#allocation3], %s762
      %s764 = sshll.u32 [#allocation2], 4
      %s765 = int_to_ptr.vmem [resolvable:$true] %s764
      %770 = dma.vmem_to_hbm [thread:$0]  %s765, 256, %s11, [#allocation3], 128, 128, 8
    $region49: #{tpu_custom_call.1} parent=1 // pred_fallthru
      _
    // Predicated region
    $region50: #{tpu_custom_call.1} parent=1 // pred_check
      _
    $region51: #{tpu_custom_call.1} parent=1 // pred_check_branch
      %772 = sbr.rel (0) target = $region53
    $region52: #{tpu_custom_call.1} parent=1 // pred_region
      %773 = dma.done [#allocation3], 256
    $region53: #{tpu_custom_call.1} parent=1 // pred_fallthru
      _
    %774 = vsyncpa [#allocation3], 1

</llo_original>
